<compile_context>
chip_gen: v7x
topology: tpu7x:2x2x1
jax: 0.10.0
libtpu: 0.0.40
codegen_flags: <defaults>
</compile_context>

<pallas_src>
import functools

import jax
import jax.numpy as jnp
from jax import lax
from jax.experimental import pallas as pl
from jax.experimental.pallas import tpu as pltpu

ALPHA = 0.9
LLAMBDA = 1000.0

_COMPILER_PARAMS = pltpu.CompilerParams(
    dimension_semantics=("arbitrary",),          # carried SMEM accumulator across batch tiles
    vmem_limit_bytes=48 * 1024 * 1024,           # raise scoped VMEM (default 16/32 MiB) but stay < v7x 64 MiB
)


# --------------------------------------------------------------------------- #
# Tile-size selection / padding helpers
# --------------------------------------------------------------------------- #
def _choose_tb(B: int, C: int, itemsize: int,
               budget_bytes: int = 32 * 1024 * 1024) -> int:
    """Pick a batch-tile size: as large as possible under a VMEM budget that is
    safe on all generations (2 inputs x 2 pipeline buffers x TB x C x itemsize)."""
    per_row = 2 * 2 * C * itemsize
    tb = budget_bytes // max(per_row, 1)
    tb = int(min(tb, 1024, B))
    if B <= 8:
        return B                       # single block equal to the full batch dim
    return max(8, (tb // 8) * 8)       # keep sublane-aligned tiles


def _pad_rows(x: jax.Array, b_pad: int) -> jax.Array:
    b = x.shape[0]
    if b_pad == b:
        return x
    return jnp.pad(x, ((0, b_pad - b), (0, 0)))


# --------------------------------------------------------------------------- #
# KD (soft + pseudo-hard label) loss kernel
# --------------------------------------------------------------------------- #
def _kd_loss_kernel(t_ref, s_ref, out_ref, acc_ref, *, alpha: float, true_b: int):
    pid = pl.program_id(0)

    @pl.when(pid == 0)
    def _():
        acc_ref[0, 0] = 0.0

    t = t_ref[...].astype(jnp.float32)   # teacher logits tile (TB, C)
    s = s_ref[...].astype(jnp.float32)   # student logits tile (TB, C)
    TB, C = t.shape

    # ---- student log-softmax (numerically stable) ----
    s_max = jnp.max(s, axis=1, keepdims=True)
    s_shift = s - s_max
    s_lse = jnp.log(jnp.sum(jnp.exp(s_shift), axis=1, keepdims=True))
    log_p_s = s_shift - s_lse                                       # (TB, C)

    # ---- teacher softmax pieces (normalization folded in, p_t not separately reduced) ----
    t_max = jnp.max(t, axis=1, keepdims=True)
    t_exp = jnp.exp(t - t_max)
    t_sum = jnp.sum(t_exp, axis=1, keepdims=True)                   # (TB, 1)

    # ---- hard label = argmax(teacher, dim=1), first max index on ties ----
    col_idx = lax.broadcasted_iota(jnp.int32, (TB, C), 1)
    argmax_idx = jnp.min(jnp.where(t == t_max, col_idx, C), axis=1, keepdims=True)  # (TB,1)

    # ---- fused target: alpha * softmax(t) + (1 - alpha) * onehot(argmax) ----
    # single (TB, C) cross-lane reduction for the whole loss
    w = t_exp * (alpha * pl.reciprocal(t_sum))                      # alpha * p_t   (exact recip)
    w = jnp.where(col_idx == argmax_idx, w + (1.0 - alpha), w)
    row_loss = -jnp.sum(w * log_p_s, axis=1, keepdims=True)         # (TB, 1)

    # ---- mask padded batch rows, accumulate mean over the true batch ----
    row_idx = pid * TB + lax.broadcasted_iota(jnp.int32, (TB, 1), 0)
    row_loss = jnp.where(row_idx < true_b, row_loss, 0.0)
    acc_ref[0, 0] += jnp.sum(row_loss) * (1.0 / float(true_b))

    @pl.when(pid == pl.num_programs(0) - 1)
    def _():
        out_ref[0, 0] = acc_ref[0, 0]


def kd_loss(teacher_out: jax.Array, student_out: jax.Array,
            alpha: float = ALPHA) -> jax.Array:
    """KD loss on [B, C] logits. Returns a scalar f32."""
    assert teacher_out.shape == student_out.shape
    B, C = teacher_out.shape
    itemsize = max(jnp.dtype(teacher_out.dtype).itemsize,
                   jnp.dtype(student_out.dtype).itemsize)
    tb = _choose_tb(B, C, itemsize)
    b_pad = pl.cdiv(B, tb) * tb
    t = _pad_rows(teacher_out, b_pad)
    s = _pad_rows(student_out, b_pad)

    out = pl.pallas_call(
        functools.partial(_kd_loss_kernel, alpha=float(alpha), true_b=B),
        out_shape=jax.ShapeDtypeStruct((1, 1), jnp.float32),
        grid=(b_pad // tb,),
        in_specs=[
            pl.BlockSpec((tb, C), lambda i: (i, 0)),
            pl.BlockSpec((tb, C), lambda i: (i, 0)),
        ],
        out_specs=pl.BlockSpec(memory_space=pltpu.SMEM),
        scratch_shapes=[pltpu.SMEM((1, 1), jnp.float32)],
        compiler_params=_COMPILER_PARAMS,
    )(t, s)
    return out[0, 0]


# --------------------------------------------------------------------------- #
# Attention-aware (Euclid) layer loss kernel
# --------------------------------------------------------------------------- #
def _at_loss_kernel(t_ref, s_ref, out_ref, acc_ref, *, true_b: int, eps: float = 1e-12):
    pid = pl.program_id(0)

    @pl.when(pid == 0)
    def _():
        acc_ref[0, 0] = 0.0

    t = t_ref[...].astype(jnp.float32)   # flattened teacher layer tile (TB, D)
    s = s_ref[...].astype(jnp.float32)   # flattened student layer tile (TB, D)
    TB, D = t.shape

    # F.normalize(p=2, dim=1): x / max(||x||_2, eps)
    t_norm = jnp.sqrt(jnp.sum(t * t, axis=1, keepdims=True))
    s_norm = jnp.sqrt(jnp.sum(s * s, axis=1, keepdims=True))
    t_n = t * pl.reciprocal(jnp.maximum(t_norm, eps))
    s_n = s * pl.reciprocal(jnp.maximum(s_norm, eps))

    d = s_n - t_n
    row = jnp.sqrt(jnp.sum(d * d, axis=1, keepdims=True))           # (TB, 1)

    row_idx = pid * TB + lax.broadcasted_iota(jnp.int32, (TB, 1), 0)
    row = jnp.where(row_idx < true_b, row, 0.0)
    acc_ref[0, 0] += jnp.sum(row) * (1.0 / float(true_b))

    @pl.when(pid == pl.num_programs(0) - 1)
    def _():
        out_ref[0, 0] = acc_ref[0, 0]


def at_layer_loss(t_layer: jax.Array, s_layer: jax.Array) -> jax.Array:
    """mean_b || l2norm(flatten(s)) - l2norm(flatten(t)) ||_2 for one layer pair."""
    B = t_layer.shape[0]
    t = t_layer.reshape(B, -1)
    s = s_layer.reshape(B, -1)
    assert t.shape == s.shape
    D = t.shape[1]
    itemsize = max(jnp.dtype(t.dtype).itemsize, jnp.dtype(s.dtype).itemsize)
    tb = _choose_tb(B, D, itemsize)
    b_pad = pl.cdiv(B, tb) * tb
    t = _pad_rows(t, b_pad)
    s = _pad_rows(s, b_pad)

    out = pl.pallas_call(
        functools.partial(_at_loss_kernel, true_b=B),
        out_shape=jax.ShapeDtypeStruct((1, 1), jnp.float32),
        grid=(b_pad // tb,),
        in_specs=[
            pl.BlockSpec((tb, D), lambda i: (i, 0)),
            pl.BlockSpec((tb, D), lambda i: (i, 0)),
        ],
        out_specs=pl.BlockSpec(memory_space=pltpu.SMEM),
        scratch_shapes=[pltpu.SMEM((1, 1), jnp.float32)],
        compiler_params=_COMPILER_PARAMS,
    )(t, s)
    return out[0, 0]


# --------------------------------------------------------------------------- #
# Full EuclidAttentionAwareKDLoss forward
# --------------------------------------------------------------------------- #
def euclid_attention_aware_kd_loss(outputs, llambda: float = LLAMBDA,
                                   alpha: float = ALPHA) -> jax.Array:
    """outputs = [[teacher_out, teacher_layers], [student_out, student_layers]]."""
    teacher_out, teacher_layers = outputs[0]
    student_out, student_layers = outputs[1]

    at_loss = jnp.float32(0.0)
    for t_layer, s_layer in zip(teacher_layers, student_layers):
        at_loss = at_loss + at_layer_loss(t_layer, s_layer)

    ce_loss = kd_loss(teacher_out, student_out, alpha=alpha)
    return (llambda / 2.0) * at_loss + ce_loss


# --------------------------------------------------------------------------- #
# Pure-JAX reference for validation
# --------------------------------------------------------------------------- #
def _ref_loss(outputs, llambda=LLAMBDA, alpha=ALPHA):
    teacher_out, teacher_layers = outputs[0]
    student_out, student_layers = outputs[1]

    t = teacher_out.astype(jnp.float32)
    s = student_out.astype(jnp.float32)
    log_p_s = jax.nn.log_softmax(s, axis=1)
    p_t = jax.nn.softmax(t, axis=1)
    soft_loss = jnp.mean(-jnp.sum(p_t * log_p_s, axis=1))
    hard_idx = jnp.argmax(t, axis=1)
    hard_loss = jnp.mean(-jnp.take_along_axis(log_p_s, hard_idx[:, None], axis=1)[:, 0])
    ce = alpha * soft_loss + (1.0 - alpha) * hard_loss

    at = jnp.float32(0.0)
    for tl, sl in zip(teacher_layers, student_layers):
        tf = tl.reshape(tl.shape[0], -1).astype(jnp.float32)
        sf = sl.reshape(sl.shape[0], -1).astype(jnp.float32)
        tn = tf / jnp.maximum(jnp.linalg.norm(tf, axis=1, keepdims=True), 1e-12)
        sn = sf / jnp.maximum(jnp.linalg.norm(sf, axis=1, keepdims=True), 1e-12)
        at = at + jnp.mean(jnp.linalg.norm(sn - tn, axis=1))
    return (llambda / 2.0) * at + ce


if __name__ == "__main__":
    key = jax.random.PRNGKey(0)
    k = jax.random.split(key, 6)

    B, C = 4, 32                                  # small logits: batch=4, classes=32
    teacher_out = jax.random.normal(k[0], (B, C), dtype=jnp.float32)
    student_out = jax.random.normal(k[1], (B, C), dtype=jnp.float32)
    teacher_layers = [
        jax.random.normal(k[2], (B, 8, 8, 8), dtype=jnp.float32),   # flattened D = 512
        jax.random.normal(k[3], (B, 16, 4, 4), dtype=jnp.float32),  # flattened D = 256
    ]
    student_layers = [
        jax.random.normal(k[4], (B, 8, 8, 8), dtype=jnp.float32),
        jax.random.normal(k[5], (B, 16, 4, 4), dtype=jnp.float32),
    ]

    outputs = [[teacher_out, teacher_layers], [student_out, student_layers]]

    loss = euclid_attention_aware_kd_loss(outputs)
    loss = jax.block_until_ready(loss)

    ref = _ref_loss(outputs)
    assert jnp.allclose(loss, ref, rtol=1e-4, atol=1e-3), (loss, ref)

    print("KERNEL_OK")
</pallas_src>

<mosaic_0001>
module attributes {stable_mosaic.version = 11 : i64} {
  func.func @_at_loss_kernel(%arg0: i32, %arg1: memref<4x512xf32, #tpu.memory_space<vmem>>, %arg2: memref<4x512xf32, #tpu.memory_space<vmem>>, %arg3: memref<1x1xf32, #tpu.memory_space<smem>>, %arg4: memref<1x1xf32, #tpu.memory_space<smem>>) attributes {dimension_semantics = [#tpu.dimension_semantics<arbitrary>], iteration_bounds = array<i64: 1>, scalar_prefetch = 0 : i64, scratch_operands = 1 : i64, tpu.core_type = #tpu.core_type<tc>, window_params = [{transform_indices = @transform_0, window_bounds = array<i64: 4, 512>}, {transform_indices = @transform_1, window_bounds = array<i64: 4, 512>}, {transform_indices = @transform_2, window_bounds = array<i64: 1, 1>}]} {
    %c0_i32 = arith.constant 0 : i32
    %0 = arith.cmpi eq, %arg0, %c0_i32 : i32
    %1 = arith.extui %0 : i1 to i32
    %c0_i32_0 = arith.constant 0 : i32
    %2 = arith.cmpi ne, %1, %c0_i32_0 : i32
    scf.if %2 {
      %cst_18 = arith.constant 0.000000e+00 : f32
      %c0_19 = arith.constant 0 : index
      %c0_20 = arith.constant 0 : index
      %47 = memref.load %arg4[%c0_19, %c0_20] : memref<1x1xf32, #tpu.memory_space<smem>>
      memref.store %cst_18, %arg4[%c0_19, %c0_20] : memref<1x1xf32, #tpu.memory_space<smem>>
    } else {
    }
    %c0 = arith.constant 0 : index
    %c0_1 = arith.constant 0 : index
    %3 = vector.load %arg1[%c0, %c0_1] : memref<4x512xf32, #tpu.memory_space<vmem>>, vector<4x512xf32>
    %c0_2 = arith.constant 0 : index
    %c0_3 = arith.constant 0 : index
    %4 = vector.load %arg2[%c0_2, %c0_3] : memref<4x512xf32, #tpu.memory_space<vmem>>, vector<4x512xf32>
    %5 = arith.mulf %3, %3 : vector<4x512xf32>
    %cst = arith.constant dense<0.000000e+00> : vector<4xf32>
    %6 = vector.multi_reduction <add>, %5, %cst [1] : vector<4x512xf32> to vector<4xf32>
    %7 = vector.shape_cast %6 : vector<4xf32> to vector<4x1xf32>
    %8 = math.sqrt %7 : vector<4x1xf32>
    %9 = arith.mulf %4, %4 : vector<4x512xf32>
    %cst_4 = arith.constant dense<0.000000e+00> : vector<4xf32>
    %10 = vector.multi_reduction <add>, %9, %cst_4 [1] : vector<4x512xf32> to vector<4xf32>
    %11 = vector.shape_cast %10 : vector<4xf32> to vector<4x1xf32>
    %12 = math.sqrt %11 : vector<4x1xf32>
    %cst_5 = arith.constant 9.99999996E-13 : f32
    %13 = vector.broadcast %cst_5 : f32 to vector<4x1xf32>
    %14 = arith.maximumf %8, %13 : vector<4x1xf32>
    %15 = tpu.reciprocal %14 : vector<4x1xf32> -> vector<4x1xf32>
    %16 = vector.broadcast %15 : vector<4x1xf32> to vector<4x512xf32>
    %17 = arith.mulf %3, %16 : vector<4x512xf32>
    %cst_6 = arith.constant 9.99999996E-13 : f32
    %18 = vector.broadcast %cst_6 : f32 to vector<4x1xf32>
    %19 = arith.maximumf %12, %18 : vector<4x1xf32>
    %20 = tpu.reciprocal %19 : vector<4x1xf32> -> vector<4x1xf32>
    %21 = vector.broadcast %20 : vector<4x1xf32> to vector<4x512xf32>
    %22 = arith.mulf %4, %21 : vector<4x512xf32>
    %23 = arith.subf %22, %17 : vector<4x512xf32>
    %24 = arith.mulf %23, %23 : vector<4x512xf32>
    %cst_7 = arith.constant dense<0.000000e+00> : vector<4xf32>
    %25 = vector.multi_reduction <add>, %24, %cst_7 [1] : vector<4x512xf32> to vector<4xf32>
    %26 = vector.shape_cast %25 : vector<4xf32> to vector<4x1xf32>
    %27 = math.sqrt %26 : vector<4x1xf32>
    %c4_i32 = arith.constant 4 : i32
    %28 = arith.muli %arg0, %c4_i32 : i32
    %29 = tpu.iota {dimensions = array<i32: 0>} : vector<4x1xi32>
    %30 = vector.broadcast %28 : i32 to vector<4x1xi32>
    %31 = arith.addi %30, %29 : vector<4x1xi32>
    %c4_i32_8 = arith.constant 4 : i32
    %32 = vector.broadcast %c4_i32_8 : i32 to vector<4x1xi32>
    %33 = arith.cmpi slt, %31, %32 : vector<4x1xi32>
    %cst_9 = arith.constant 0.000000e+00 : f32
    %34 = vector.broadcast %cst_9 : f32 to vector<4x1xf32>
    %35 = arith.select %33, %27, %34 : vector<4x1xi1>, vector<4x1xf32>
    %c0_10 = arith.constant 0 : index
    %c0_11 = arith.constant 0 : index
    %36 = memref.load %arg4[%c0_10, %c0_11] : memref<1x1xf32, #tpu.memory_space<smem>>
    %37 = vector.shape_cast %35 : vector<4x1xf32> to vector<1x4x1xf32>
    %cst_12 = arith.constant dense<0.000000e+00> : vector<1xf32>
    %38 = vector.multi_reduction <add>, %37, %cst_12 [1, 2] : vector<1x4x1xf32> to vector<1xf32>
    %39 = vector.shape_cast %38 : vector<1xf32> to vector<1x1x1xf32>
    %40 = vector.extract %39[0, 0, 0] : f32 from vector<1x1x1xf32>
    %cst_13 = arith.constant 2.500000e-01 : f32
    %41 = arith.mulf %40, %cst_13 : f32
    %42 = arith.addf %36, %41 : f32
    %c0_14 = arith.constant 0 : index
    %c0_15 = arith.constant 0 : index
    %43 = memref.load %arg4[%c0_14, %c0_15] : memref<1x1xf32, #tpu.memory_space<smem>>
    memref.store %42, %arg4[%c0_14, %c0_15] : memref<1x1xf32, #tpu.memory_space<smem>>
    %c0_i32_16 = arith.constant 0 : i32
    %44 = arith.cmpi eq, %arg0, %c0_i32_16 : i32
    %45 = arith.extui %44 : i1 to i32
    %c0_i32_17 = arith.constant 0 : i32
    %46 = arith.cmpi ne, %45, %c0_i32_17 : i32
    scf.if %46 {
      %c0_18 = arith.constant 0 : index
      %c0_19 = arith.constant 0 : index
      %47 = memref.load %arg4[%c0_18, %c0_19] : memref<1x1xf32, #tpu.memory_space<smem>>
      %c0_20 = arith.constant 0 : index
      %c0_21 = arith.constant 0 : index
      %48 = memref.load %arg3[%c0_20, %c0_21] : memref<1x1xf32, #tpu.memory_space<smem>>
      memref.store %47, %arg3[%c0_20, %c0_21] : memref<1x1xf32, #tpu.memory_space<smem>>
    } else {
    }
    return
  }
  func.func @transform_0(%arg0: i32) -> (i32, i32) {
    %c0_i32 = arith.constant 0 : i32
    %c0_i32_0 = arith.constant 0 : i32
    return %arg0, %c0_i32 : i32, i32
  }
  func.func @transform_1(%arg0: i32) -> (i32, i32) {
    %c0_i32 = arith.constant 0 : i32
    %c0_i32_0 = arith.constant 0 : i32
    return %arg0, %c0_i32 : i32, i32
  }
  func.func @transform_2(%arg0: i32) -> (i32, i32) {
    %c0_i32 = arith.constant 0 : i32
    %c0_i32_0 = arith.constant 0 : i32
    %c0_i32_1 = arith.constant 0 : i32
    return %c0_i32, %c0_i32_0 : i32, i32
  }
}

</mosaic_0001>

<llo_original>
// kernel: tpu_custom_call.1
$region0: #{tpu_custom_call.1}
  #allocation0 [shape = 'u32[]', space=smem, size = 0x4, offset = 0x4, fixed_abs, tag = 'smem constant byte address 0x4 - core index']
  #allocation1 [shape = 'u32[144,128]{1,0:T(1,128)}', space=vmem, size = 0x12000, scoped, tag = 'internal scratch']
  #allocation2 [shape = 'f32[1,1]{1,0:T(1,128)}', space=smem, size = 0x200, scoped, tag = 'scratch operand']
  %s0 = inlined_call_operand.hbm [shape: f32[4,512], index: 0, kind: input, shape index: {}]
  %s1 = inlined_call_operand.hbm [shape: f32[4,512], index: 1, kind: input, shape index: {}]
  %s2 = inlined_call_operand.hbm [shape: f32[1,1], index: 2, kind: output, shape index: {}]
  %s3 = sld [smem:[#allocation0]]
  $region34: #{tpu_custom_call.1} parent=0
    _
  %s5 = ssub.s32 1, %s3
  %s6 = scalar_select 0, %s5, %s3
  $region1: #{tpu_custom_call.1} parent=0
    #allocation3 [shape = 'u8[8192]{0}', space=vmem, size = 0x2000, scoped, tag = 'input window, operand 0, single buffered']
    #allocation4 [shape = 's32[1]{0}', space=sflag, size = 0x4, scoped, tag = 'scoped memory for tpu_custom_call.1']
    #allocation5 [shape = 's32[1]{0}', space=sflag, size = 0x4, scoped, tag = 'scoped memory for tpu_custom_call.1']
    #allocation6 [shape = 'u8[8192]{0}', space=vmem, size = 0x2000, scoped, tag = 'input window, operand 1, single buffered']
    #allocation7 [shape = 's32[1]{0}', space=sflag, size = 0x4, scoped, tag = 'scoped memory for tpu_custom_call.1']
    #allocation8 [shape = 'u8[512]{0}', space=smem, size = 0x200, scoped, tag = 'output window, operand 0, single buffered']
    %7 = vsyncpa [#allocation4], 0
    %8 = vsyncpa [#allocation7], 0
    %9 = vsyncpa [#allocation5], 0
    // Predicated region
    $region2: #{tpu_custom_call.1} parent=1 // pred_check
      _
    $region3: #{tpu_custom_call.1} parent=1 // pred_check_branch
      %11 = sbr.rel (0) target = $region5
    $region4: #{tpu_custom_call.1} parent=1 // pred_region
      %s13 = ssub.s32 256, 256
      %14 = vsyncadd [#allocation4], %s13
      %s16 = sshll.u32 [#allocation3], 4
      %s17 = int_to_ptr.vmem [resolvable:$true] %s16
      %19 = dma.hbm_to_vmem [thread:$0]  %s0, 256, %s17, [#allocation4]
    $region5: #{tpu_custom_call.1} parent=1 // pred_fallthru
      _
    // Predicated region
    $region6: #{tpu_custom_call.1} parent=1 // pred_check
      _
    $region7: #{tpu_custom_call.1} parent=1 // pred_check_branch
      %21 = sbr.rel (0) target = $region9
    $region8: #{tpu_custom_call.1} parent=1 // pred_region
      %s23 = ssub.s32 256, 256
      %24 = vsyncadd [#allocation7], %s23
      %s26 = sshll.u32 [#allocation6], 4
      %s27 = int_to_ptr.vmem [resolvable:$true] %s26
      %29 = dma.hbm_to_vmem [thread:$0]  %s1, 256, %s27, [#allocation7]
    $region9: #{tpu_custom_call.1} parent=1 // pred_fallthru
      _
    // Predicated region
    $region10: #{tpu_custom_call.1} parent=1 // pred_check
      _
    $region11: #{tpu_custom_call.1} parent=1 // pred_check_branch
      %31 = sbr.rel (0) target = $region13
    $region12: #{tpu_custom_call.1} parent=1 // pred_region
      %32 = dma.done [#allocation4], 256
    $region13: #{tpu_custom_call.1} parent=1 // pred_fallthru
      _
    // Predicated region
    $region14: #{tpu_custom_call.1} parent=1 // pred_check
      _
    $region15: #{tpu_custom_call.1} parent=1 // pred_check_branch
      %34 = sbr.rel (0) target = $region17
    $region16: #{tpu_custom_call.1} parent=1 // pred_region
      %35 = dma.done [#allocation7], 256
    $region17: #{tpu_custom_call.1} parent=1 // pred_fallthru
      _
    %p36 = scmp.eq.s32.totalorder 0, 0
    // Predicated region
    $region18: #{tpu_custom_call.1} parent=1 // pred_check
      %p37 = pneg %p36
    $region19: #{tpu_custom_call.1} parent=1 // pred_check_branch
      %39 = sbr.rel (%p37) target = $region21
    $region20: #{tpu_custom_call.1} parent=1 // pred_region
      %s40 = scalar_lea.smem [#allocation2], 0
      %41 = sst [smem:[%s40]] 0.0
    $region21: #{tpu_custom_call.1} parent=1 // pred_fallthru
      _
    %v42 = vld [vmem:[#allocation3] sm:$0xff]
    %v43 = vld [vmem:[#allocation3 + $0x8] sm:$0xff]
    %v44 = vld [vmem:[#allocation6] sm:$0xff]
    %v45 = vld [vmem:[#allocation6 + $0x8] sm:$0xff]
    %v46 = vmul.f32 %v42, %v42
    %v47 = vmul.f32 %v43, %v43
    %v50 = vcombine.high %v46, %v46
    %v51 = vcombine.high %v47, %v47
    %vm54 = vcmask 1043456
    %v55 = vsel %vm54, %v46, 0.0
    %v56 = vsel %vm54, %v50, 0.0
    %v57 = vadd.f32 %v55, %v56
    %v58 = vsel %vm54, %v47, 0.0
    %v59 = vadd.f32 %v57, %v58
    %v60 = vsel %vm54, %v51, 0.0
    %v61 = vadd.f32 %v59, %v60
    %62 = vadd.xlane.f32.xlu0 %v61
    %v63 = vpop.xlane.xlu0 %62
    %v64 = vrsqrt.pop %v63
    %v65 = vmul.f32 %v63, %v64
    %vm66 = vcmp.eq.f32.partialorder %v63, inf
    %v67 = vsel %vm66, %v63, %v65
    %vm68 = vcmp.eq.f32.partialorder %v63, 0.0
    %v69 = vand.u32 %v63, 2147483648
    %v70 = vsel %vm68, %v69, %v67
    %v71 = vmul.f32 %v44, %v44
    %v72 = vmul.f32 %v45, %v45
    %v75 = vcombine.high %v71, %v71
    %v76 = vcombine.high %v72, %v72
    %v79 = vsel %vm54, %v71, 0.0
    %v80 = vsel %vm54, %v75, 0.0
    %v81 = vadd.f32 %v79, %v80
    %v82 = vsel %vm54, %v72, 0.0
    %v83 = vadd.f32 %v81, %v82
    %v84 = vsel %vm54, %v76, 0.0
    %v85 = vadd.f32 %v83, %v84
    %86 = vadd.xlane.f32.xlu0 %v85
    %v87 = vpop.xlane.xlu0 %86
    %v88 = vrsqrt.pop %v87
    %v89 = vmul.f32 %v87, %v88
    %vm90 = vcmp.eq.f32.partialorder %v87, inf
    %v91 = vsel %vm90, %v87, %v89
    %vm92 = vcmp.eq.f32.partialorder %v87, 0.0
    %v93 = vand.u32 %v87, 2147483648
    %v94 = vsel %vm92, %v93, %v91
    %v95 = vmax.f32 %v70, 1e-12
    %v96 = vrcp.pop %v95
    %v99 = vunpack.c.l.s4 839922192
    %v100 = vunpack.c.0.s8 %v99
    %v101 = vlaneseq
    %v102 = vshrl.u32 %v101, 7
    %v103 = vsub.s32 %v100, %v102
    %v104 = vrot.slane %v96, %v103
    %v106 = vmul.f32 %v42, %v104
    %v107 = vmul.f32 %v43, %v104
    %v108 = vmax.f32 %v94, 1e-12
    %v109 = vrcp.pop %v108
    %v112 = vunpack.c.l.s4 839922192
    %v113 = vunpack.c.0.s8 %v112
    %v114 = vlaneseq
    %v115 = vshrl.u32 %v114, 7
    %v116 = vsub.s32 %v113, %v115
    %v117 = vrot.slane %v109, %v116
    %v119 = vmul.f32 %v44, %v117
    %v120 = vmul.f32 %v45, %v117
    %v121 = vsub.f32 %v119, %v106
    %v122 = vsub.f32 %v120, %v107
    %v123 = vmul.f32 %v121, %v121
    %v124 = vmul.f32 %v122, %v122
    %v127 = vcombine.high %v123, %v123
    %v128 = vcombine.high %v124, %v124
    %v131 = vsel %vm54, %v123, 0.0
    %v132 = vsel %vm54, %v127, 0.0
    %v133 = vadd.f32 %v131, %v132
    %v134 = vsel %vm54, %v124, 0.0
    %v135 = vadd.f32 %v133, %v134
    %v136 = vsel %vm54, %v128, 0.0
    %v137 = vadd.f32 %v135, %v136
    %138 = vadd.xlane.f32.xlu0 %v137
    %v139 = vpop.xlane.xlu0 %138
    %v140 = vrsqrt.pop %v139
    %v141 = vmul.f32 %v139, %v140
    %vm142 = vcmp.eq.f32.partialorder %v139, inf
    %v143 = vsel %vm142, %v139, %v141
    %vm144 = vcmp.eq.f32.partialorder %v139, 0.0
    %v145 = vand.u32 %v139, 2147483648
    %v146 = vsel %vm144, %v145, %v143
    %s147 = smul.u32 0, 4
    %v148 = vlaneseq
    %v149 = vshrl.u32 %v148, 7
    %v150 = vstv %s147
    %v151 = vadd.s32 %v150, %v149
    %vm152 = vcmp.lt.s32.totalorder %v151, 4
    %v153 = vsel %vm152, %v146, 0.0
    %s154 = sld [smem:[#allocation2]]
    %vm155 = vcmask 3072
    %v156 = vsel %vm155, %v153, 0.0
    %157 = vadd.xlane.f32.xlu0 %v156
    %v158 = vpop.xlane.xlu0 %157
    %v159 = vrot.slane %v158, 4
    %v160 = vadd.f32 %v158, %v159
    %v161 = vrot.slane %v160, 2
    %v162 = vadd.f32 %v160, %v161
    %v163 = vrot.slane %v162, 1
    %v164 = vadd.f32 %v162, %v163
    %s165 = vtos %v164
    %s166 = smul.f32 %s165, 0.25
    %s167 = sadd.f32 %s154, %s166
    %s168 = scalar_lea.smem [#allocation2], 0
    %169 = sst [smem:[%s168]] %s167
    // Predicated region
    $region22: #{tpu_custom_call.1} parent=1 // pred_check
      %p170 = pneg %p36
    $region23: #{tpu_custom_call.1} parent=1 // pred_check_branch
      %172 = sbr.rel (%p170) target = $region25
    $region24: #{tpu_custom_call.1} parent=1 // pred_region
      %s173 = sld [smem:[#allocation2]]
      %s174 = scalar_lea.smem [#allocation8], 0
      %175 = sst [smem:[%s174]] %s173
    $region25: #{tpu_custom_call.1} parent=1 // pred_fallthru
      _
    // Predicated region
    $region26: #{tpu_custom_call.1} parent=1 // pred_check
      _
    $region27: #{tpu_custom_call.1} parent=1 // pred_check_branch
      %177 = sbr.rel (0) target = $region29
    $region28: #{tpu_custom_call.1} parent=1 // pred_region
      %s179 = ssub.s32 16, 16
      %180 = vsyncadd [#allocation5], %s179
      %183 = dma.smem_to_hbm [#allocation8], 16, %s2, [#allocation5]
    $region29: #{tpu_custom_call.1} parent=1 // pred_fallthru
      _
    // Predicated region
    $region30: #{tpu_custom_call.1} parent=1 // pred_check
      _
    $region31: #{tpu_custom_call.1} parent=1 // pred_check_branch
      %185 = sbr.rel (0) target = $region33
    $region32: #{tpu_custom_call.1} parent=1 // pred_region
      %186 = dma.done [#allocation5], 16
    $region33: #{tpu_custom_call.1} parent=1 // pred_fallthru
      _
    %187 = sfence
    %188 = vsyncpa [#allocation4], 1
    %189 = vsyncpa [#allocation7], 1
    %190 = vsyncpa [#allocation5], 1

</llo_original>
